<compile_context>
chip_gen: v6e
topology: v6e:2x2x1
jax: 0.10.0
libtpu: 0.0.40
codegen_flags: <defaults>
</compile_context>

<pallas_src>
import functools

import jax
import jax.numpy as jnp
from jax.experimental import pallas as pl
from jax.experimental.pallas import tpu as pltpu


C_IN, C_FEAT, HIDDEN, HIDDEN2, N_OUT = 4, 32, 32, 16, 8
K_COLS = 9 * C_IN          # im2col row width for a 3x3 conv


def _round_up(x, m):
    return (x + m - 1) // m * m


def _pick_batch_block(B, cap=64):
    """Largest divisor of B that is <= cap while keeping >= 2 grid steps (v7x)."""
    best = 1
    for bb in range(1, min(B, cap) + 1):
        if B % bb == 0 and (B == 1 or B // bb >= 2):
            best = bb
    return best


# ----------------------------------------------------------------------------
# Fused forward kernel: one batch block (BB images) per grid step.
# ----------------------------------------------------------------------------
def _fused_forward_kernel(x_ref, mask_ref, conv_w_ref, conv_b_ref,
                          res_w_ref, res_b_ref,
                          s1_w_ref, s1_b_ref,
                          s2_w_ref, s2_b_ref,
                          o_ref, *, bb, chunk, n_chunks):
    conv_w = conv_w_ref[...]                       # [36, C_FEAT] (VMEM-resident)
    conv_b = conv_b_ref[...]                       # [1, C_FEAT]

    # ---- conv3x3 + ReLU + masked global-average-pool, per image, in CHUNK-row
    # tiles.  One K=36 MXU dot per tile; the pool is a second MXU dot against
    # the pre-scaled mask row (also zeroes out padded rows).  The chunk loop is
    # a short static Python loop (2-3 iters) with 128-aligned static offsets.
    pooled_rows = []
    for b in range(bb):
        pooled = jnp.zeros((1, C_FEAT), jnp.float32)
        for c in range(n_chunks):
            off = c * chunk                                     # static, 128-aligned
            patch = x_ref[b, pl.ds(off, chunk), :]              # [chunk, 36]
            act = jnp.maximum(
                jnp.dot(patch, conv_w, preferred_element_type=jnp.float32)
                + conv_b, 0.0)                                  # [chunk, C_FEAT]
            mrow = mask_ref[:, pl.ds(off, chunk)]               # [1, chunk]
            pooled = pooled + jnp.dot(mrow, act,
                                      preferred_element_type=jnp.float32)
        pooled_rows.append(pooled)
    pooled_all = (pooled_rows[0] if bb == 1
                  else jnp.concatenate(pooled_rows, axis=0))    # [bb, C_FEAT]

    # ---- resnet fc + StyleNet MLP: one M=bb chain of dots per block; all
    # weights VMEM-resident, no HBM intermediates for the narrow activations.
    feat = jnp.maximum(
        jnp.dot(pooled_all, res_w_ref[...], preferred_element_type=jnp.float32)
        + res_b_ref[...], 0.0)
    h1 = jnp.maximum(
        jnp.dot(feat, s1_w_ref[...], preferred_element_type=jnp.float32)
        + s1_b_ref[...], 0.0)
    out = (jnp.dot(h1, s2_w_ref[...], preferred_element_type=jnp.float32)
           + s2_b_ref[...])
    o_ref[...] = out.astype(o_ref.dtype)           # one dense (bb, N_OUT) store


# ----------------------------------------------------------------------------
# Model: Associate_Style_Model.forward == StyleNet(resnet(x))
# ----------------------------------------------------------------------------
def init_params(key):
    ks = jax.random.split(key, 8)
    s = 0.05
    return {
        # "resnet": conv3x3(C_IN->C_FEAT)+ReLU + GAP + fc(C_FEAT->HIDDEN)+ReLU
        # conv_w layout: [tap = dy*3+dx, C_in, C_out].
        # TODO(synk): real PyTorch conv weights (O,I,kH,kW) must be permuted to
        # (kH,kW,I,O) and reshaped to (9, I, O) before loading here.
        "conv_w":   s * jax.random.normal(ks[0], (9, C_IN, C_FEAT), jnp.float32),
        "conv_b":   s * jax.random.normal(ks[1], (1, C_FEAT), jnp.float32),
        "res_fc_w": s * jax.random.normal(ks[2], (C_FEAT, HIDDEN), jnp.float32),
        "res_fc_b": s * jax.random.normal(ks[3], (1, HIDDEN), jnp.float32),
        # "StyleNet": fc(HIDDEN->HIDDEN2)+ReLU + fc(HIDDEN2->N_OUT)
        "style_w1": s * jax.random.normal(ks[4], (HIDDEN, HIDDEN2), jnp.float32),
        "style_b1": s * jax.random.normal(ks[5], (1, HIDDEN2), jnp.float32),
        "style_w2": s * jax.random.normal(ks[6], (HIDDEN2, N_OUT), jnp.float32),
        "style_b2": s * jax.random.normal(ks[7], (1, N_OUT), jnp.float32),
    }


@jax.jit
def associate_style_forward(x_nchw, params):
    B, C, H, W = x_nchw.shape
    HW = H * W
    chunk = 128 if HW >= 128 else _round_up(HW, 8)
    n_chunks = pl.cdiv(HW, chunk)
    HWc = n_chunks * chunk                     # padded pixel-row count
    bb = _pick_batch_block(B)                  # images per grid step
    G = B // bb                                # grid steps (>= 2 when B >= 2)

    # Glue: NCHW -> NHWC, spatial zero-pad, host-side im2col to a [B, HWc, 36]
    # slab.  Column order is (dy, dx, c_in), matching conv_w.reshape(36, C_FEAT).
    x_nhwc = jnp.transpose(x_nchw, (0, 2, 3, 1)).astype(jnp.float32)
    x_pad = jnp.pad(x_nhwc, ((0, 0), (1, 1), (1, 1), (0, 0)))
    cols = jnp.concatenate(
        [x_pad[:, dy:dy + H, dx:dx + W, :] for dy in range(3) for dx in range(3)],
        axis=-1)                                          # [B, H, W, 36]
    cols = cols.reshape(B, HW, K_COLS)
    cols = jnp.pad(cols, ((0, 0), (0, HWc - HW), (0, 0)))  # pad rows -> HWc

    conv_w36 = params["conv_w"].reshape(K_COLS, C_FEAT)
    # Pre-scaled pooling mask row: 1/(H*W) on valid pixel rows, 0 on pad rows.
    pool_mask = ((jnp.arange(HWc) < HW).astype(jnp.float32) / (H * W))[None, :]

    kernel = functools.partial(_fused_forward_kernel, bb=bb, chunk=chunk,
                               n_chunks=n_chunks)
    resident = lambda g: (0, 0)
    out = pl.pallas_call(
        kernel,
        out_shape=jax.ShapeDtypeStruct((G, bb, N_OUT), jnp.float32),
        grid=(G,),
        in_specs=[
            pl.BlockSpec((bb, HWc, K_COLS), lambda g: (g, 0, 0)),  # batch block
            pl.BlockSpec((1, HWc), resident),                      # pool mask
            pl.BlockSpec((K_COLS, C_FEAT), resident),              # conv weights
            pl.BlockSpec((1, C_FEAT), resident),
            pl.BlockSpec((C_FEAT, HIDDEN), resident),
            pl.BlockSpec((1, HIDDEN), resident),
            pl.BlockSpec((HIDDEN, HIDDEN2), resident),
            pl.BlockSpec((1, HIDDEN2), resident),
            pl.BlockSpec((HIDDEN2, N_OUT), resident),
            pl.BlockSpec((1, N_OUT), resident),
        ],
        out_specs=pl.BlockSpec((None, bb, N_OUT), lambda g: (g, 0, 0)),
        compiler_params=pltpu.CompilerParams(
            dimension_semantics=("parallel",),
            vmem_limit_bytes=32 * 1024 * 1024),
    )(cols, pool_mask, conv_w36, params["conv_b"],
      params["res_fc_w"], params["res_fc_b"],
      params["style_w1"], params["style_b1"],
      params["style_w2"], params["style_b2"])
    return out.reshape(B, N_OUT)


if __name__ == "__main__":
    key = jax.random.PRNGKey(0)
    k_x, k_p = jax.random.split(key)

    B, H, W = 2, 16, 16
    x = jax.random.normal(k_x, (B, C_IN, H, W), jnp.float32)   # NCHW, PyTorch-style
    params = init_params(k_p)

    y = associate_style_forward(x, params)
    jax.block_until_ready(y)
    assert y.shape == (B, N_OUT), y.shape

    # Pure-JAX reference (explicit im2col) for a correctness sanity check.
    hp = jax.lax.Precision.HIGHEST

    def ref_forward(xin, p):
        xt = jnp.transpose(xin, (0, 2, 3, 1)).astype(jnp.float32)
        xp = jnp.pad(xt, ((0, 0), (1, 1), (1, 1), (0, 0)))
        pats = jnp.stack([xp[:, dy:dy + H, dx:dx + W, :]
                          for dy in range(3) for dx in range(3)], axis=3)
        pats = pats.reshape(B, H * W, 9 * C_IN)
        w = p["conv_w"].reshape(9 * C_IN, C_FEAT)
        conv = jnp.maximum(jnp.dot(pats, w, precision=hp) + p["conv_b"], 0.0)
        pooled = conv.mean(axis=1)
        feat = jnp.maximum(jnp.dot(pooled, p["res_fc_w"], precision=hp)
                           + p["res_fc_b"], 0.0)
        h1 = jnp.maximum(jnp.dot(feat, p["style_w1"], precision=hp)
                         + p["style_b1"], 0.0)
        return jnp.dot(h1, p["style_w2"], precision=hp) + p["style_b2"]

    y_ref = ref_forward(x, params)
    assert jnp.allclose(y, y_ref, atol=2e-3, rtol=1e-2), \
        float(jnp.max(jnp.abs(y - y_ref)))

    print("KERNEL_OK")
</pallas_src>

<mosaic_0001>
module attributes {stable_mosaic.version = 11 : i64} {
  func.func @_fused_forward_kernel(%arg0: i32, %arg1: memref<1x256x36xf32, #tpu.memory_space<vmem>>, %arg2: memref<1x256xf32, #tpu.memory_space<vmem>>, %arg3: memref<36x32xf32, #tpu.memory_space<vmem>>, %arg4: memref<1x32xf32, #tpu.memory_space<vmem>>, %arg5: memref<32x32xf32, #tpu.memory_space<vmem>>, %arg6: memref<1x32xf32, #tpu.memory_space<vmem>>, %arg7: memref<32x16xf32, #tpu.memory_space<vmem>>, %arg8: memref<1x16xf32, #tpu.memory_space<vmem>>, %arg9: memref<16x8xf32, #tpu.memory_space<vmem>>, %arg10: memref<1x8xf32, #tpu.memory_space<vmem>>, %arg11: memref<1x1x8xf32, #tpu.memory_space<vmem>>) attributes {dimension_semantics = [#tpu.dimension_semantics<parallel>], iteration_bounds = array<i64: 2>, scalar_prefetch = 0 : i64, scratch_operands = 0 : i64, tpu.core_type = #tpu.core_type<tc>, window_params = [{transform_indices = @transform_0, window_bounds = array<i64: 1, 256, 36>}, {pipeline_mode = #tpu.pipeline_mode<synchronous>, transform_indices = @transform_1, window_bounds = array<i64: 1, 256>}, {pipeline_mode = #tpu.pipeline_mode<synchronous>, transform_indices = @transform_2, window_bounds = array<i64: 36, 32>}, {pipeline_mode = #tpu.pipeline_mode<synchronous>, transform_indices = @transform_3, window_bounds = array<i64: 1, 32>}, {pipeline_mode = #tpu.pipeline_mode<synchronous>, transform_indices = @transform_4, window_bounds = array<i64: 32, 32>}, {pipeline_mode = #tpu.pipeline_mode<synchronous>, transform_indices = @transform_5, window_bounds = array<i64: 1, 32>}, {pipeline_mode = #tpu.pipeline_mode<synchronous>, transform_indices = @transform_6, window_bounds = array<i64: 32, 16>}, {pipeline_mode = #tpu.pipeline_mode<synchronous>, transform_indices = @transform_7, window_bounds = array<i64: 1, 16>}, {pipeline_mode = #tpu.pipeline_mode<synchronous>, transform_indices = @transform_8, window_bounds = array<i64: 16, 8>}, {pipeline_mode = #tpu.pipeline_mode<synchronous>, transform_indices = @transform_9, window_bounds = array<i64: 1, 8>}, {transform_indices = @transform_10, window_bounds = array<i64: 1, 1, 8>}]} {
    %c0 = arith.constant 0 : index
    %c0_0 = arith.constant 0 : index
    %0 = vector.load %arg3[%c0, %c0_0] : memref<36x32xf32, #tpu.memory_space<vmem>>, vector<36x32xf32>
    %c0_1 = arith.constant 0 : index
    %c0_2 = arith.constant 0 : index
    %1 = vector.load %arg4[%c0_1, %c0_2] : memref<1x32xf32, #tpu.memory_space<vmem>>, vector<1x32xf32>
    %cst = arith.constant 0.000000e+00 : f32
    %2 = vector.broadcast %cst : f32 to vector<1x32xf32>
    %c0_3 = arith.constant 0 : index
    %c0_4 = arith.constant 0 : index
    %c0_5 = arith.constant 0 : index
    %3 = vector.load %arg1[%c0_3, %c0_4, %c0_5] : memref<1x256x36xf32, #tpu.memory_space<vmem>>, vector<1x128x36xf32>
    %4 = vector.shape_cast %3 : vector<1x128x36xf32> to vector<128x36xf32>
    %cst_6 = arith.constant dense<0.000000e+00> : vector<128x32xf32>
    %5 = tpu.matmul %4, %0, %cst_6 {dimension_numbers = #tpu.dot_dimension_numbers<[1], [0], [0], [1], [0, 0, 1, 1], [], []>} : vector<128x36xf32>, vector<36x32xf32>, vector<128x32xf32> -> vector<128x32xf32>
    %6 = vector.broadcast %1 : vector<1x32xf32> to vector<128x32xf32>
    %7 = arith.addf %5, %6 : vector<128x32xf32>
    %cst_7 = arith.constant 0.000000e+00 : f32
    %8 = vector.broadcast %cst_7 : f32 to vector<128x32xf32>
    %9 = arith.maximumf %7, %8 : vector<128x32xf32>
    %c0_8 = arith.constant 0 : index
    %c0_9 = arith.constant 0 : index
    %10 = vector.load %arg2[%c0_8, %c0_9] : memref<1x256xf32, #tpu.memory_space<vmem>>, vector<1x128xf32>
    %cst_10 = arith.constant dense<0.000000e+00> : vector<1x32xf32>
    %11 = tpu.matmul %10, %9, %cst_10 {dimension_numbers = #tpu.dot_dimension_numbers<[1], [0], [0], [1], [0, 0, 1, 1], [], []>} : vector<1x128xf32>, vector<128x32xf32>, vector<1x32xf32> -> vector<1x32xf32>
    %12 = arith.addf %2, %11 : vector<1x32xf32>
    %c0_11 = arith.constant 0 : index
    %c128 = arith.constant 128 : index
    %c0_12 = arith.constant 0 : index
    %13 = vector.load %arg1[%c0_11, %c128, %c0_12] : memref<1x256x36xf32, #tpu.memory_space<vmem>>, vector<1x128x36xf32>
    %14 = vector.shape_cast %13 : vector<1x128x36xf32> to vector<128x36xf32>
    %cst_13 = arith.constant dense<0.000000e+00> : vector<128x32xf32>
    %15 = tpu.matmul %14, %0, %cst_13 {dimension_numbers = #tpu.dot_dimension_numbers<[1], [0], [0], [1], [0, 0, 1, 1], [], []>} : vector<128x36xf32>, vector<36x32xf32>, vector<128x32xf32> -> vector<128x32xf32>
    %16 = vector.broadcast %1 : vector<1x32xf32> to vector<128x32xf32>
    %17 = arith.addf %15, %16 : vector<128x32xf32>
    %cst_14 = arith.constant 0.000000e+00 : f32
    %18 = vector.broadcast %cst_14 : f32 to vector<128x32xf32>
    %19 = arith.maximumf %17, %18 : vector<128x32xf32>
    %c0_15 = arith.constant 0 : index
    %c128_16 = arith.constant 128 : index
    %20 = vector.load %arg2[%c0_15, %c128_16] : memref<1x256xf32, #tpu.memory_space<vmem>>, vector<1x128xf32>
    %cst_17 = arith.constant dense<0.000000e+00> : vector<1x32xf32>
    %21 = tpu.matmul %20, %19, %cst_17 {dimension_numbers = #tpu.dot_dimension_numbers<[1], [0], [0], [1], [0, 0, 1, 1], [], []>} : vector<1x128xf32>, vector<128x32xf32>, vector<1x32xf32> -> vector<1x32xf32>
    %22 = arith.addf %12, %21 : vector<1x32xf32>
    %c0_18 = arith.constant 0 : index
    %c0_19 = arith.constant 0 : index
    %23 = vector.load %arg5[%c0_18, %c0_19] : memref<32x32xf32, #tpu.memory_space<vmem>>, vector<32x32xf32>
    %cst_20 = arith.constant dense<0.000000e+00> : vector<1x32xf32>
    %24 = tpu.matmul %22, %23, %cst_20 {dimension_numbers = #tpu.dot_dimension_numbers<[1], [0], [0], [1], [0, 0, 1, 1], [], []>} : vector<1x32xf32>, vector<32x32xf32>, vector<1x32xf32> -> vector<1x32xf32>
    %c0_21 = arith.constant 0 : index
    %c0_22 = arith.constant 0 : index
    %25 = vector.load %arg6[%c0_21, %c0_22] : memref<1x32xf32, #tpu.memory_space<vmem>>, vector<1x32xf32>
    %26 = arith.addf %24, %25 : vector<1x32xf32>
    %cst_23 = arith.constant 0.000000e+00 : f32
    %27 = vector.broadcast %cst_23 : f32 to vector<1x32xf32>
    %28 = arith.maximumf %26, %27 : vector<1x32xf32>
    %c0_24 = arith.constant 0 : index
    %c0_25 = arith.constant 0 : index
    %29 = vector.load %arg7[%c0_24, %c0_25] : memref<32x16xf32, #tpu.memory_space<vmem>>, vector<32x16xf32>
    %cst_26 = arith.constant dense<0.000000e+00> : vector<1x16xf32>
    %30 = tpu.matmul %28, %29, %cst_26 {dimension_numbers = #tpu.dot_dimension_numbers<[1], [0], [0], [1], [0, 0, 1, 1], [], []>} : vector<1x32xf32>, vector<32x16xf32>, vector<1x16xf32> -> vector<1x16xf32>
    %c0_27 = arith.constant 0 : index
    %c0_28 = arith.constant 0 : index
    %31 = vector.load %arg8[%c0_27, %c0_28] : memref<1x16xf32, #tpu.memory_space<vmem>>, vector<1x16xf32>
    %32 = arith.addf %30, %31 : vector<1x16xf32>
    %cst_29 = arith.constant 0.000000e+00 : f32
    %33 = vector.broadcast %cst_29 : f32 to vector<1x16xf32>
    %34 = arith.maximumf %32, %33 : vector<1x16xf32>
    %c0_30 = arith.constant 0 : index
    %c0_31 = arith.constant 0 : index
    %35 = vector.load %arg9[%c0_30, %c0_31] : memref<16x8xf32, #tpu.memory_space<vmem>>, vector<16x8xf32>
    %cst_32 = arith.constant dense<0.000000e+00> : vector<1x8xf32>
    %36 = tpu.matmul %34, %35, %cst_32 {dimension_numbers = #tpu.dot_dimension_numbers<[1], [0], [0], [1], [0, 0, 1, 1], [], []>} : vector<1x16xf32>, vector<16x8xf32>, vector<1x8xf32> -> vector<1x8xf32>
    %c0_33 = arith.constant 0 : index
    %c0_34 = arith.constant 0 : index
    %37 = vector.load %arg10[%c0_33, %c0_34] : memref<1x8xf32, #tpu.memory_space<vmem>>, vector<1x8xf32>
    %38 = arith.addf %36, %37 : vector<1x8xf32>
    %c0_35 = arith.constant 0 : index
    %c0_36 = arith.constant 0 : index
    %c0_37 = arith.constant 0 : index
    %39 = vector.load %arg11[%c0_35, %c0_36, %c0_37] : memref<1x1x8xf32, #tpu.memory_space<vmem>>, vector<1x1x8xf32>
    %40 = vector.shape_cast %39 : vector<1x1x8xf32> to vector<1x8xf32>
    %41 = vector.shape_cast %38 : vector<1x8xf32> to vector<1x1x8xf32>
    tpu.vector_store %arg11[%c0_35, %c0_36, %c0_37], %41 {strides = array<i32>} : memref<1x1x8xf32, #tpu.memory_space<vmem>>, vector<1x1x8xf32>,
    return
  }
  func.func @transform_0(%arg0: i32) -> (i32, i32, i32) {
    %c0_i32 = arith.constant 0 : i32
    %c0_i32_0 = arith.constant 0 : i32
    %c0_i32_1 = arith.constant 0 : i32
    return %arg0, %c0_i32, %c0_i32_0 : i32, i32, i32
  }
  func.func @transform_1(%arg0: i32) -> (i32, i32) {
    %c0_i32 = arith.constant 0 : i32
    %c0_i32_0 = arith.constant 0 : i32
    %c0_i32_1 = arith.constant 0 : i32
    return %c0_i32, %c0_i32_0 : i32, i32
  }
  func.func @transform_2(%arg0: i32) -> (i32, i32) {
    %c0_i32 = arith.constant 0 : i32
    %c0_i32_0 = arith.constant 0 : i32
    %c0_i32_1 = arith.constant 0 : i32
    return %c0_i32, %c0_i32_0 : i32, i32
  }
  func.func @transform_3(%arg0: i32) -> (i32, i32) {
    %c0_i32 = arith.constant 0 : i32
    %c0_i32_0 = arith.constant 0 : i32
    %c0_i32_1 = arith.constant 0 : i32
    return %c0_i32, %c0_i32_0 : i32, i32
  }
  func.func @transform_4(%arg0: i32) -> (i32, i32) {
    %c0_i32 = arith.constant 0 : i32
    %c0_i32_0 = arith.constant 0 : i32
    %c0_i32_1 = arith.constant 0 : i32
    return %c0_i32, %c0_i32_0 : i32, i32
  }
  func.func @transform_5(%arg0: i32) -> (i32, i32) {
    %c0_i32 = arith.constant 0 : i32
    %c0_i32_0 = arith.constant 0 : i32
    %c0_i32_1 = arith.constant 0 : i32
    return %c0_i32, %c0_i32_0 : i32, i32
  }
  func.func @transform_6(%arg0: i32) -> (i32, i32) {
    %c0_i32 = arith.constant 0 : i32
    %c0_i32_0 = arith.constant 0 : i32
    %c0_i32_1 = arith.constant 0 : i32
    return %c0_i32, %c0_i32_0 : i32, i32
  }
  func.func @transform_7(%arg0: i32) -> (i32, i32) {
    %c0_i32 = arith.constant 0 : i32
    %c0_i32_0 = arith.constant 0 : i32
    %c0_i32_1 = arith.constant 0 : i32
    return %c0_i32, %c0_i32_0 : i32, i32
  }
  func.func @transform_8(%arg0: i32) -> (i32, i32) {
    %c0_i32 = arith.constant 0 : i32
    %c0_i32_0 = arith.constant 0 : i32
    %c0_i32_1 = arith.constant 0 : i32
    return %c0_i32, %c0_i32_0 : i32, i32
  }
  func.func @transform_9(%arg0: i32) -> (i32, i32) {
    %c0_i32 = arith.constant 0 : i32
    %c0_i32_0 = arith.constant 0 : i32
    %c0_i32_1 = arith.constant 0 : i32
    return %c0_i32, %c0_i32_0 : i32, i32
  }
  func.func @transform_10(%arg0: i32) -> (i32, i32, i32) {
    %c0_i32 = arith.constant 0 : i32
    %c0_i32_0 = arith.constant 0 : i32
    %c0_i32_1 = arith.constant 0 : i32
    return %arg0, %c0_i32, %c0_i32_0 : i32, i32, i32
  }
}

</mosaic_0001>

<llo_original>
// kernel: associate_style_forward.1
$region0: #{associate_style_forward.1}
  #allocation0 [shape = 'u32[]', space=smem, size = 0x4, offset = 0x4, fixed_abs, tag = 'smem constant byte address 0x4 - core index']
  #allocation1 [shape = 'u32[144,128]{1,0:T(1,128)}', space=vmem, size = 0x12000, scoped, tag = 'internal scratch']
  %s0 = inlined_call_operand.vmem [shape: f32[2,256,36], index: 0, kind: input, shape index: {}]
  %s1 = inlined_call_operand.vmem [shape: f32[1,256], index: 1, kind: input, shape index: {}]
  %s2 = inlined_call_operand.vmem [shape: f32[36,32], index: 2, kind: input, shape index: {}]
  %s3 = inlined_call_operand.vmem [shape: f32[1,32], index: 3, kind: input, shape index: {}]
  %s4 = inlined_call_operand.vmem [shape: f32[32,32], index: 4, kind: input, shape index: {}]
  %s5 = inlined_call_operand.vmem [shape: f32[1,32], index: 5, kind: input, shape index: {}]
  %s6 = inlined_call_operand.vmem [shape: f32[32,16], index: 6, kind: input, shape index: {}]
  %s7 = inlined_call_operand.vmem [shape: f32[1,16], index: 7, kind: input, shape index: {}]
  %s8 = inlined_call_operand.vmem [shape: f32[16,8], index: 8, kind: input, shape index: {}]
  %s9 = inlined_call_operand.vmem [shape: f32[1,8], index: 9, kind: input, shape index: {}]
  %s10 = inlined_call_operand.hbm [shape: f32[2,1,8], index: 10, kind: output, shape index: {}]
  %s11 = sld [smem:[#allocation0]]
  $region73: #{associate_style_forward.1} parent=0
    _
  %s13 = ssub.s32 1, %s11
  %s14 = scalar_select 0, %s13, %s11
  $region1: #{associate_style_forward.1} parent=0
    #allocation2 [shape = 'u8[1024]{0}', space=vmem, size = 0x400, scoped, tag = 'output window, operand 0']
    #allocation3 [shape = 's32[2]{0}', space=sflag, size = 0x8, scoped, tag = 'scoped memory for associate_style_forward.1']
    %15 = vsyncpa [#allocation3], 0
    %s16 = scalar_lea.sflag [#allocation3], 1
    %17 = vsyncpa %s16, 0
    loop: start=0, step=1, limit=4
    $region2: #{associate_style_forward.1} parent=1 // loop_pre_header
      _
    $region3: #{associate_style_forward.1} parent=1 // loop_header
      %s19 = sphi 0, %s23
      %p20 = scmp.ge.s32.totalorder %s19, 4
      %s29 = sphi 0, %s31
      %s32 = sphi 0, %s29
      %s33 = sphi 0, %s32
      %s49 = sphi 0, %s33
      %s53 = sphi 0, %s53
      %s55 = sphi 0, %s53
      %s56 = sphi 0, %s55
      %s70 = sphi 0, %s56
      %s74 = sphi 0, %s74
      %s76 = sphi 0, %s74
      %s77 = sphi 0, %s76
      %s91 = sphi 0, %s77
      %s95 = sphi 0, %s95
      %s97 = sphi 0, %s95
      %s98 = sphi 0, %s97
      %s112 = sphi 0, %s98
      %s116 = sphi 0, %s116
      %s118 = sphi 0, %s116
      %s119 = sphi 0, %s118
      %s133 = sphi 0, %s119
      %s137 = sphi 0, %s137
      %s139 = sphi 0, %s137
      %s140 = sphi 0, %s139
      %s154 = sphi 0, %s140
      %s158 = sphi 0, %s158
      %s160 = sphi 0, %s158
      %s161 = sphi 0, %s160
      %s175 = sphi 0, %s161
      %s179 = sphi 0, %s179
      %s181 = sphi 0, %s179
      %s182 = sphi 0, %s181
      %s196 = sphi 0, %s182
      %s200 = sphi 0, %s200
      %s202 = sphi 0, %s200
      %s203 = sphi 0, %s202
      %s217 = sphi 0, %s203
      %s221 = sphi 0, %s221
      %s223 = sphi 0, %s221
      %s224 = sphi 0, %s223
      %s238 = sphi 0, %s224
      %s244 = sphi 0, %s246
      %s247 = sphi 0, %s244
      %s248 = sphi 0, %s247
      %s264 = sphi 0, %s248
    $region4: #{associate_style_forward.1} parent=1 // loop_header_branch
      %22 = sbr.rel (%p20) target = $region8
    $region5: #{associate_style_forward.1} parent=1 // loop_body
      %s24 = ssub.s32 %s19, 1
      %s25 = ssub.s32 %s19, 2
      %s26 = sadd.s32 %s19, 1
      %s27 = ssub.s32 %s19, %s26
      %p28 = scmp.eq.s32.totalorder %s27, 0
      %s30 = sadd.s32 %s29, 1
      %s31 = scalar_select %p28, %s29, %s30
      %p34 = pneg %p28
      %p35 = scmp.eq.s32.totalorder %s19, 1
      %p36 = por %p34, %p35
      %p37 = scmp.ne.s32.totalorder %s29, %s32
      %p38 = scmp.eq.s32.totalorder %s19, 0
      %p39 = por %p37, %p38
      %p40 = scmp.ne.s32.totalorder %s29, %s32
      %p41 = scmp.eq.s32.totalorder %s24, 1
      %p42 = por %p40, %p41
      %p43 = scmp.ne.s32.totalorder %s32, %s33
      %p44 = scmp.eq.s32.totalorder %s24, 0
      %p45 = por %p43, %p44
      %p46 = scmp.ne.s32.totalorder %s32, %s33
      %p47 = scmp.eq.s32.totalorder %s25, 1
      %p48 = por %p46, %p47
      %p50 = scmp.ne.s32.totalorder %s33, %s49
      %p51 = scmp.eq.s32.totalorder %s25, 0
      %p52 = por %p50, %p51
      %s54 = sadd.s32 %s53, 1
      %p57 = scmp.eq.s32.totalorder %s19, 1
      %p58 = scmp.ne.s32.totalorder %s53, %s55
      %p59 = scmp.eq.s32.totalorder %s19, 0
      %p60 = por %p58, %p59
      %p61 = scmp.ne.s32.totalorder %s53, %s55
      %p62 = scmp.eq.s32.totalorder %s24, 1
      %p63 = por %p61, %p62
      %p64 = scmp.ne.s32.totalorder %s55, %s56
      %p65 = scmp.eq.s32.totalorder %s24, 0
      %p66 = por %p64, %p65
      %p67 = scmp.ne.s32.totalorder %s55, %s56
      %p68 = scmp.eq.s32.totalorder %s25, 1
      %p69 = por %p67, %p68
      %p71 = scmp.ne.s32.totalorder %s56, %s70
      %p72 = scmp.eq.s32.totalorder %s25, 0
      %p73 = por %p71, %p72
      %s75 = sadd.s32 %s74, 1
      %p78 = scmp.eq.s32.totalorder %s19, 1
      %p79 = scmp.ne.s32.totalorder %s74, %s76
      %p80 = scmp.eq.s32.totalorder %s19, 0
      %p81 = por %p79, %p80
      %p82 = scmp.ne.s32.totalorder %s74, %s76
      %p83 = scmp.eq.s32.totalorder %s24, 1
      %p84 = por %p82, %p83
      %p85 = scmp.ne.s32.totalorder %s76, %s77
      %p86 = scmp.eq.s32.totalorder %s24, 0
      %p87 = por %p85, %p86
      %p88 = scmp.ne.s32.totalorder %s76, %s77
      %p89 = scmp.eq.s32.totalorder %s25, 1
      %p90 = por %p88, %p89
      %p92 = scmp.ne.s32.totalorder %s77, %s91
      %p93 = scmp.eq.s32.totalorder %s25, 0
      %p94 = por %p92, %p93
      %s96 = sadd.s32 %s95, 1
      %p99 = scmp.eq.s32.totalorder %s19, 1
      %p100 = scmp.ne.s32.totalorder %s95, %s97
      %p101 = scmp.eq.s32.totalorder %s19, 0
      %p102 = por %p100, %p101
      %p103 = scmp.ne.s32.totalorder %s95, %s97
      %p104 = scmp.eq.s32.totalorder %s24, 1
      %p105 = por %p103, %p104
      %p106 = scmp.ne.s32.totalorder %s97, %s98
      %p107 = scmp.eq.s32.totalorder %s24, 0
      %p108 = por %p106, %p107
      %p109 = scmp.ne.s32.totalorder %s97, %s98
      %p110 = scmp.eq.s32.totalorder %s25, 1
      %p111 = por %p109, %p110
      %p113 = scmp.ne.s32.totalorder %s98, %s112
      %p114 = scmp.eq.s32.totalorder %s25, 0
      %p115 = por %p113, %p114
      %s117 = sadd.s32 %s116, 1
      %p120 = scmp.eq.s32.totalorder %s19, 1
      %p121 = scmp.ne.s32.totalorder %s116, %s118
      %p122 = scmp.eq.s32.totalorder %s19, 0
      %p123 = por %p121, %p122
      %p124 = scmp.ne.s32.totalorder %s116, %s118
      %p125 = scmp.eq.s32.totalorder %s24, 1
      %p126 = por %p124, %p125
      %p127 = scmp.ne.s32.totalorder %s118, %s119
      %p128 = scmp.eq.s32.totalorder %s24, 0
      %p129 = por %p127, %p128
      %p130 = scmp.ne.s32.totalorder %s118, %s119
      %p131 = scmp.eq.s32.totalorder %s25, 1
      %p132 = por %p130, %p131
      %p134 = scmp.ne.s32.totalorder %s119, %s133
      %p135 = scmp.eq.s32.totalorder %s25, 0
      %p136 = por %p134, %p135
      %s138 = sadd.s32 %s137, 1
      %p141 = scmp.eq.s32.totalorder %s19, 1
      %p142 = scmp.ne.s32.totalorder %s137, %s139
      %p143 = scmp.eq.s32.totalorder %s19, 0
      %p144 = por %p142, %p143
      %p145 = scmp.ne.s32.totalorder %s137, %s139
      %p146 = scmp.eq.s32.totalorder %s24, 1
      %p147 = por %p145, %p146
      %p148 = scmp.ne.s32.totalorder %s139, %s140
      %p149 = scmp.eq.s32.totalorder %s24, 0
      %p150 = por %p148, %p149
      %p151 = scmp.ne.s32.totalorder %s139, %s140
      %p152 = scmp.eq.s32.totalorder %s25, 1
      %p153 = por %p151, %p152
      %p155 = scmp.ne.s32.totalorder %s140, %s154
      %p156 = scmp.eq.s32.totalorder %s25, 0
      %p157 = por %p155, %p156
      %s159 = sadd.s32 %s158, 1
      %p162 = scmp.eq.s32.totalorder %s19, 1
      %p163 = scmp.ne.s32.totalorder %s158, %s160
      %p164 = scmp.eq.s32.totalorder %s19, 0
      %p165 = por %p163, %p164
      %p166 = scmp.ne.s32.totalorder %s158, %s160
      %p167 = scmp.eq.s32.totalorder %s24, 1
      %p168 = por %p166, %p167
      %p169 = scmp.ne.s32.totalorder %s160, %s161
      %p170 = scmp.eq.s32.totalorder %s24, 0
      %p171 = por %p169, %p170
      %p172 = scmp.ne.s32.totalorder %s160, %s161
      %p173 = scmp.eq.s32.totalorder %s25, 1
      %p174 = por %p172, %p173
      %p176 = scmp.ne.s32.totalorder %s161, %s175
      %p177 = scmp.eq.s32.totalorder %s25, 0
      %p178 = por %p176, %p177
      %s180 = sadd.s32 %s179, 1
      %p183 = scmp.eq.s32.totalorder %s19, 1
      %p184 = scmp.ne.s32.totalorder %s179, %s181
      %p185 = scmp.eq.s32.totalorder %s19, 0
      %p186 = por %p184, %p185
      %p187 = scmp.ne.s32.totalorder %s179, %s181
      %p188 = scmp.eq.s32.totalorder %s24, 1
      %p189 = por %p187, %p188
      %p190 = scmp.ne.s32.totalorder %s181, %s182
      %p191 = scmp.eq.s32.totalorder %s24, 0
      %p192 = por %p190, %p191
      %p193 = scmp.ne.s32.totalorder %s181, %s182
      %p194 = scmp.eq.s32.totalorder %s25, 1
      %p195 = por %p193, %p194
      %p197 = scmp.ne.s32.totalorder %s182, %s196
      %p198 = scmp.eq.s32.totalorder %s25, 0
      %p199 = por %p197, %p198
      %s201 = sadd.s32 %s200, 1
      %p204 = scmp.eq.s32.totalorder %s19, 1
      %p205 = scmp.ne.s32.totalorder %s200, %s202
      %p206 = scmp.eq.s32.totalorder %s19, 0
      %p207 = por %p205, %p206
      %p208 = scmp.ne.s32.totalorder %s200, %s202
      %p209 = scmp.eq.s32.totalorder %s24, 1
      %p210 = por %p208, %p209
      %p211 = scmp.ne.s32.totalorder %s202, %s203
      %p212 = scmp.eq.s32.totalorder %s24, 0
      %p213 = por %p211, %p212
      %p214 = scmp.ne.s32.totalorder %s202, %s203
      %p215 = scmp.eq.s32.totalorder %s25, 1
      %p216 = por %p214, %p215
      %p218 = scmp.ne.s32.totalorder %s203, %s217
      %p219 = scmp.eq.s32.totalorder %s25, 0
      %p220 = por %p218, %p219
      %s222 = sadd.s32 %s221, 1
      %p225 = scmp.eq.s32.totalorder %s19, 1
      %p226 = scmp.ne.s32.totalorder %s221, %s223
      %p227 = scmp.eq.s32.totalorder %s19, 0
      %p228 = por %p226, %p227
      %p229 = scmp.ne.s32.totalorder %s221, %s223
      %p230 = scmp.eq.s32.totalorder %s24, 1
      %p231 = por %p229, %p230
      %p232 = scmp.ne.s32.totalorder %s223, %s224
      %p233 = scmp.eq.s32.totalorder %s24, 0
      %p234 = por %p232, %p233
      %p235 = scmp.ne.s32.totalorder %s223, %s224
      %p236 = scmp.eq.s32.totalorder %s25, 1
      %p237 = por %p235, %p236
      %p239 = scmp.ne.s32.totalorder %s224, %s238
      %p240 = scmp.eq.s32.totalorder %s25, 0
      %p241 = por %p239, %p240
      %s242 = ssub.s32 %s19, %s26
      %p243 = scmp.eq.s32.totalorder %s242, 0
      %s245 = sadd.s32 %s244, 1
      %s246 = scalar_select %p243, %s244, %s245
      %p249 = pneg %p243
      %p250 = scmp.eq.s32.totalorder %s19, 1
      %p251 = por %p249, %p250
      %p252 = scmp.ne.s32.totalorder %s244, %s247
      %p253 = scmp.eq.s32.totalorder %s19, 0
      %p254 = por %p252, %p253
      %p255 = scmp.ne.s32.totalorder %s244, %s247
      %p256 = scmp.eq.s32.totalorder %s24, 1
      %p257 = por %p255, %p256
      %p258 = scmp.ne.s32.totalorder %s247, %s248
      %p259 = scmp.eq.s32.totalorder %s24, 0
      %p260 = por %p258, %p259
      %p261 = scmp.ne.s32.totalorder %s247, %s248
      %p262 = scmp.eq.s32.totalorder %s25, 1
      %p263 = por %p261, %p262
      %p265 = scmp.ne.s32.totalorder %s248, %s264
      %p266 = scmp.eq.s32.totalorder %s25, 0
      %p267 = por %p265, %p266
      %p268 = scmp.le.s32.totalorder 1, %s19
      %p269 = scmp.lt.s32.totalorder %s19, 3
      %p270 = pnand %p268, %p269
      %p271 = pneg %p270
      // Predicated region
      $region9: #{associate_style_forward.1} parent=5 // pred_check
        _
      $region10: #{associate_style_forward.1} parent=5 // pred_check_branch
        %273 = sbr.rel (%p270) target = $region12
      $region11: #{associate_style_forward.1} parent=5 // pred_region
        %s274 = ssub.s32 %s19, 1
        // Predicated region
        $region13: #{associate_style_forward.1} parent=11 // pred_check
          %p275 = pneg %p66
        $region14: #{associate_style_forward.1} parent=11 // pred_check_branch
          %277 = sbr.rel (%p275) target = $region16
        $region15: #{associate_style_forward.1} parent=11 // pred_region
          _
        $region16: #{associate_style_forward.1} parent=11 // pred_fallthru
          _
        // Predicated region
        $region17: #{associate_style_forward.1} parent=11 // pred_check
          %p278 = pneg %p87
        $region18: #{associate_style_forward.1} parent=11 // pred_check_branch
          %280 = sbr.rel (%p278) target = $region20
        $region19: #{associate_style_forward.1} parent=11 // pred_region
          _
        $region20: #{associate_style_forward.1} parent=11 // pred_fallthru
          _
        // Predicated region
        $region21: #{associate_style_forward.1} parent=11 // pred_check
          %p281 = pneg %p108
        $region22: #{associate_style_forward.1} parent=11 // pred_check_branch
          %283 = sbr.rel (%p281) target = $region24
        $region23: #{associate_style_forward.1} parent=11 // pred_region
          _
        $region24: #{associate_style_forward.1} parent=11 // pred_fallthru
          _
        // Predicated region
        $region25: #{associate_style_forward.1} parent=11 // pred_check
          %p284 = pneg %p129
        $region26: #{associate_style_forward.1} parent=11 // pred_check_branch
          %286 = sbr.rel (%p284) target = $region28
        $region27: #{associate_style_forward.1} parent=11 // pred_region
          _
        $region28: #{associate_style_forward.1} parent=11 // pred_fallthru
          _
        // Predicated region
        $region29: #{associate_style_forward.1} parent=11 // pred_check
          %p287 = pneg %p150
        $region30: #{associate_style_forward.1} parent=11 // pred_check_branch
          %289 = sbr.rel (%p287) target = $region32
        $region31: #{associate_style_forward.1} parent=11 // pred_region
          _
        $region32: #{associate_style_forward.1} parent=11 // pred_fallthru
          _
        // Predicated region
        $region33: #{associate_style_forward.1} parent=11 // pred_check
          %p290 = pneg %p171
        $region34: #{associate_style_forward.1} parent=11 // pred_check_branch
          %292 = sbr.rel (%p290) target = $region36
        $region35: #{associate_style_forward.1} parent=11 // pred_region
          _
        $region36: #{associate_style_forward.1} parent=11 // pred_fallthru
          _
        // Predicated region
        $region37: #{associate_style_forward.1} parent=11 // pred_check
          %p293 = pneg %p192
        $region38: #{associate_style_forward.1} parent=11 // pred_check_branch
          %295 = sbr.rel (%p293) target = $region40
        $region39: #{associate_style_forward.1} parent=11 // pred_region
          _
        $region40: #{associate_style_forward.1} parent=11 // pred_fallthru
          _
        // Predicated region
        $region41: #{associate_style_forward.1} parent=11 // pred_check
          %p296 = pneg %p213
        $region42: #{associate_style_forward.1} parent=11 // pred_check_branch
          %298 = sbr.rel (%p296) target = $region44
        $region43: #{associate_style_forward.1} parent=11 // pred_region
          _
        $region44: #{associate_style_forward.1} parent=11 // pred_fallthru
          _
        // Predicated region
        $region45: #{associate_style_forward.1} parent=11 // pred_check
          %p299 = pneg %p234
        $region46: #{associate_style_forward.1} parent=11 // pred_check_branch
          %301 = sbr.rel (%p299) target = $region48
        $region47: #{associate_style_forward.1} parent=11 // pred_region
          _
        $region48: #{associate_style_forward.1} parent=11 // pred_fallthru
          _
      $region12: #{associate_style_forward.1} parent=5 // pred_fallthru
        _
      %p302 = scmp.lt.s32.totalorder %s19, 2
      // Predicated region
      $region49: #{associate_style_forward.1} parent=5 // pred_check
        %p303 = pneg %p302
      $region50: #{associate_style_forward.1} parent=5 // pred_check_branch
        %305 = sbr.rel (%p303) target = $region52
      $region51: #{associate_style_forward.1} parent=5 // pred_region
        // Predicated region
        $region53: #{associate_style_forward.1} parent=51 // pred_check
          %p306 = pneg %p39
        $region54: #{associate_style_forward.1} parent=51 // pred_check_branch
          %308 = sbr.rel (%p306) target = $region56
        $region55: #{associate_style_forward.1} parent=51 // pred_region
          %p309 = scmp.lt.s32.totalorder %s19, 1
          %s310 = scalar_select %p309, %s19, 1
          %s311 = smul.addr %s310, 32
          %s312 = smul.addr %s311, 8
          %s313 = scalar_lea.vmem %s0, %s312
        $region56: #{associate_style_forward.1} parent=51 // pred_fallthru
          _
      $region52: #{associate_style_forward.1} parent=5 // pred_fallthru
        _
      %p314 = scmp.le.s32.totalorder 1, %s19
      %p315 = scmp.lt.s32.totalorder %s19, 3
      %p316 = pnand %p314, %p315
      %p317 = pneg %p316
      // Predicated region
      $region57: #{associate_style_forward.1} parent=5 // pred_check
        _
      $region58: #{associate_style_forward.1} parent=5 // pred_check_branch
        %319 = sbr.rel (%p316) target = $region60
      $region59: #{associate_style_forward.1} parent=5 // pred_region
        %s320 = ssub.s32 %s19, 1
        %p321 = scmp.lt.s32.totalorder %s24, 1
        %s322 = scalar_select %p321, %s24, 1
        %s323 = smul.addr %s322, 32
        %s324 = smul.addr %s323, 8
        %s325 = scalar_lea.vmem %s0, %s324
        %p326 = pneg %p45
        %p327 = pneg %p42
        %p328 = pneg %p66
        %p329 = pneg %p63
        %p330 = pneg %p87
        %p331 = pneg %p84
        %p332 = pneg %p108
        %p333 = pneg %p105
        %p334 = pneg %p129
        %p335 = pneg %p126
        %p336 = pneg %p150
        %p337 = pneg %p147
        %p338 = pneg %p171
        %p339 = pneg %p168
        %p340 = pneg %p192
        %p341 = pneg %p189
        %p342 = pneg %p213
        %p343 = pneg %p210
        %p344 = pneg %p234
        %p345 = pneg %p231
        %p346 = pneg %p260
        %p347 = pneg %p257
        %s348 = sand.u32 %s247, 1
        %s349 = scalar_lea.sflag [#allocation3], %s348
        %s350 = sand.u32 %s247, 1
        %s351 = scalar_lea.vmem [#allocation2], %s350
        %p352 = scmp.lt.s32.totalorder %s24, 1
        %s353 = scalar_select %p352, %s24, 1
        %s354 = smul.addr %s353, 32
        %s355 = smul.addr %s354, 8
        %s356 = scalar_lea.vmem %s0, %s355
        %v357 = vld [vmem:[%s2] sm:$0xff]
        %v358 = vld [vmem:[%s2 + $0x8] sm:$0xff]
        %v359 = vld [vmem:[%s2 + $0x10] sm:$0xff]
        %v360 = vld [vmem:[%s2 + $0x18] sm:$0xff]
        %v361 = vld [vmem:[%s2 + $0x20] sm:$0xf]
        %v362 = vld [vmem:[%s3] sm:$0x1]
        %v363 = vld [vmem:[%s356] sm:$0xff]
        %v364 = vld [vmem:[%s356 + $0x8] sm:$0xff]
        %v365 = vld [vmem:[%s356 + $0x10] sm:$0xff]
        %v366 = vld [vmem:[%s356 + $0x18] sm:$0xff]
        %v367 = vld [vmem:[%s356 + $0x20] sm:$0xff]
        %v368 = vld [vmem:[%s356 + $0x28] sm:$0xff]
        %v369 = vld [vmem:[%s356 + $0x30] sm:$0xff]
        %v370 = vld [vmem:[%s356 + $0x38] sm:$0xff]
        %v371 = vld [vmem:[%s356 + $0x40] sm:$0xff]
        %v372 = vld [vmem:[%s356 + $0x48] sm:$0xff]
        %v373 = vld [vmem:[%s356 + $0x50] sm:$0xff]
        %v374 = vld [vmem:[%s356 + $0x58] sm:$0xff]
        %v375 = vld [vmem:[%s356 + $0x60] sm:$0xff]
        %v376 = vld [vmem:[%s356 + $0x68] sm:$0xff]
        %v377 = vld [vmem:[%s356 + $0x70] sm:$0xff]
        %v378 = vld [vmem:[%s356 + $0x78] sm:$0xff]
        %v380 = vlaneseq
        %v381 = vshrl.u32 %v380, 7
        %v382 = vsub.s32 0, %v381
        %v383 = vrot.slane %v362, %v382
        %vm385 = vcmask 293888
        %v387 = vsel %vm385, %v363, 0
        %v390 = vsel %vm385, %v364, 0
        %v393 = vsel %vm385, %v365, 0
        %v396 = vsel %vm385, %v366, 0
        %v399 = vsel %vm385, %v367, 0
        %v402 = vsel %vm385, %v368, 0
        %v405 = vsel %vm385, %v369, 0
        %v408 = vsel %vm385, %v370, 0
        %v411 = vsel %vm385, %v371, 0
        %v414 = vsel %vm385, %v372, 0
        %v417 = vsel %vm385, %v373, 0
        %v420 = vsel %vm385, %v374, 0
        %v423 = vsel %vm385, %v375, 0
        %v426 = vsel %vm385, %v376, 0
        %v429 = vsel %vm385, %v377, 0
        %v432 = vsel %vm385, %v378, 0
        %vm434 = vcmask 1043456
        %v436 = vsel %vm434, %v361, 0
        %438 = vmatprep.subr.mxu0 0.0
        %439 = vmatpush1.msra.mxu0 0.0
        %440 = vmatprep.subr.mxu0 0.0
        %441 = vmatpush1.msra.mxu0 0.0
        %442 = vmatprep.subr.mxu0 0.0
        %443 = vmatpush1.msra.mxu0 0.0
        %444 = vmatprep.subr.mxu0 0.0
        %445 = vmatpush1.msra.mxu0 0.0
        %446 = vmatprep.subr.mxu0 0.0
        %447 = vmatpush1.msra.mxu0 0.0
        %448 = vmatprep.subr.mxu0 0.0
        %449 = vmatpush1.msra.mxu0 0.0
        %450 = vmatprep.subr.mxu0 0.0
        %451 = vmatpush1.msra.mxu0 0.0
        %452 = vmatprep.subr.mxu0 0.0
        %453 = vmatpush1.msra.mxu0 0.0
        %454 = vmatprep.subr.mxu0 0.0
        %455 = vmatpush1.msra.mxu0 0.0
        %456 = vmatprep.subr.mxu0 0.0
        %457 = vmatpush1.msra.mxu0 0.0
        %458 = vmatprep.subr.mxu0 0.0
        %459 = vmatpush1.msra.mxu0 0.0
        %460 = vmatprep.subr.mxu0 0.0
        %461 = vmatpush1.msra.mxu0 %v436
        %462 = vmatprep.subr.mxu0 0.0
        %463 = vmatpush1.msra.mxu0 %v360
        %464 = vmatprep.subr.mxu0 0.0
        %465 = vmatpush1.msra.mxu0 %v359
        %466 = vmatprep.subr.mxu0 0.0
        %467 = vmatpush1.msra.mxu0 %v358
        %468 = vmatprep.subr.mxu0 0.0
        %469 = vmatpush1.msra.mxu0 %v357
        %470 = vmatprep.subr.mxu0 0.0
        %471 = vmatpush2.msra.mxu0 0.0
        %472 = vmatprep.subr.mxu0 0.0
        %473 = vmatpush2.msra.mxu0 0.0
        %474 = vmatprep.subr.mxu0 0.0
        %475 = vmatpush2.msra.mxu0 0.0
        %476 = vmatprep.subr.mxu0 0.0
        %477 = vmatpush2.msra.mxu0 0.0
        %478 = vmatprep.subr.mxu0 0.0
        %479 = vmatpush2.msra.mxu0 0.0
        %480 = vmatprep.subr.mxu0 0.0
        %481 = vmatpush2.msra.mxu0 0.0
        %482 = vmatprep.subr.mxu0 0.0
        %483 = vmatpush2.msra.mxu0 0.0
        %484 = vmatprep.subr.mxu0 0.0
        %485 = vmatpush2.msra.mxu0 0.0
        %486 = vmatprep.subr.mxu0 0.0
        %487 = vmatpush2.msra.mxu0 0.0
        %488 = vmatprep.subr.mxu0 0.0
        %489 = vmatpush2.msra.mxu0 0.0
        %490 = vmatprep.subr.mxu0 0.0
        %491 = vmatpush2.msra.mxu0 0.0
        %492 = vmatprep.subr.mxu0 0.0
        %493 = vmatpush2.msra.mxu0 0.0
        %494 = vmatprep.subr.mxu0 0.0
        %495 = vmatpush2.msra.mxu0 0.0
        %496 = vmatprep.subr.mxu0 0.0
        %497 = vmatpush2.msra.mxu0 0.0
        %498 = vmatprep.subr.mxu0 0.0
        %499 = vmatpush2.msra.mxu0 0.0
        %500 = vmatprep.subr.mxu0 0.0
        %501 = vmatpush2.msra.mxu0 0.0
        %502 = vmatprep.mubr.f32.mxu0 0.0
        %503 = vmatmul.mubr.f32.gmra.mxu0 %v387
        %v504 = vpop.f32.mrf.mxu0
        %v505 = vadd.f32 %v383, %v504
        %v506 = vpop.f32.mrf.mxu0
        %507 = vmatprep.mubr.f32.mxu0 0.0
        %508 = vmatmul.mubr.f32.gmra.mxu0 %v390
        %v509 = vpop.f32.mrf.mxu0
        %v510 = vadd.f32 %v383, %v509
        %v511 = vpop.f32.mrf.mxu0
        %512 = vmatprep.mubr.f32.mxu0 0.0
        %513 = vmatmul.mubr.f32.gmra.mxu0 %v393
        %v514 = vpop.f32.mrf.mxu0
        %v515 = vadd.f32 %v383, %v514
        %v516 = vpop.f32.mrf.mxu0
        %517 = vmatprep.mubr.f32.mxu0 0.0
        %518 = vmatmul.mubr.f32.gmra.mxu0 %v396
        %v519 = vpop.f32.mrf.mxu0
        %v520 = vadd.f32 %v383, %v519
        %v521 = vpop.f32.mrf.mxu0
        %522 = vmatprep.mubr.f32.mxu0 0.0
        %523 = vmatmul.mubr.f32.gmra.mxu0 %v399
        %v524 = vpop.f32.mrf.mxu0
        %v525 = vadd.f32 %v383, %v524
        %v526 = vpop.f32.mrf.mxu0
        %527 = vmatprep.mubr.f32.mxu0 0.0
        %528 = vmatmul.mubr.f32.gmra.mxu0 %v402
        %v529 = vpop.f32.mrf.mxu0
        %v530 = vadd.f32 %v383, %v529
        %v531 = vpop.f32.mrf.mxu0
        %532 = vmatprep.mubr.f32.mxu0 0.0
        %533 = vmatmul.mubr.f32.gmra.mxu0 %v405
        %v534 = vpop.f32.mrf.mxu0
        %v535 = vadd.f32 %v383, %v534
        %v536 = vpop.f32.mrf.mxu0
        %537 = vmatprep.mubr.f32.mxu0 0.0
        %538 = vmatmul.mubr.f32.gmra.mxu0 %v408
        %v539 = vpop.f32.mrf.mxu0
        %v540 = vadd.f32 %v383, %v539
        %v541 = vpop.f32.mrf.mxu0
        %542 = vmatprep.mubr.f32.mxu0 0.0
        %543 = vmatmul.mubr.f32.gmra.mxu0 %v411
        %v544 = vpop.f32.mrf.mxu0
        %v545 = vadd.f32 %v383, %v544
        %v546 = vpop.f32.mrf.mxu0
        %547 = vmatprep.mubr.f32.mxu0 0.0
        %548 = vmatmul.mubr.f32.gmra.mxu0 %v414
        %v549 = vpop.f32.mrf.mxu0
        %v550 = vadd.f32 %v383, %v549
        %v551 = vpop.f32.mrf.mxu0
        %552 = vmatprep.mubr.f32.mxu0 0.0
        %553 = vmatmul.mubr.f32.gmra.mxu0 %v417
        %v554 = vpop.f32.mrf.mxu0
        %v555 = vadd.f32 %v383, %v554
        %v556 = vpop.f32.mrf.mxu0
        %557 = vmatprep.mubr.f32.mxu0 0.0
        %558 = vmatmul.mubr.f32.gmra.mxu0 %v420
        %v559 = vpop.f32.mrf.mxu0
        %v560 = vadd.f32 %v383, %v559
        %v561 = vpop.f32.mrf.mxu0
        %562 = vmatprep.mubr.f32.mxu0 0.0
        %563 = vmatmul.mubr.f32.gmra.mxu0 %v423
        %v564 = vpop.f32.mrf.mxu0
        %v565 = vadd.f32 %v383, %v564
        %v566 = vpop.f32.mrf.mxu0
        %567 = vmatprep.mubr.f32.mxu0 0.0
        %568 = vmatmul.mubr.f32.gmra.mxu0 %v426
        %v569 = vpop.f32.mrf.mxu0
        %v570 = vadd.f32 %v383, %v569
        %v571 = vpop.f32.mrf.mxu0
        %572 = vmatprep.mubr.f32.mxu0 0.0
        %573 = vmatmul.mubr.f32.gmra.mxu0 %v429
        %v574 = vpop.f32.mrf.mxu0
        %v575 = vadd.f32 %v383, %v574
        %v576 = vpop.f32.mrf.mxu0
        %577 = vmatprep.mubr.f32.mxu0 0.0
        %578 = vmatmul.mubr.f32.gmra.mxu0 %v432
        %v579 = vpop.f32.mrf.mxu0
        %v580 = vadd.f32 %v383, %v579
        %v581 = vpop.f32.mrf.mxu0
        %582 = vdwg.mxu0
        %v583 = vmax.f32 %v505, 0.0
        %v584 = vmax.f32 %v510, 0.0
        %v585 = vmax.f32 %v515, 0.0
        %v586 = vmax.f32 %v520, 0.0
        %v587 = vmax.f32 %v525, 0.0
        %v588 = vmax.f32 %v530, 0.0
        %v589 = vmax.f32 %v535, 0.0
        %v590 = vmax.f32 %v540, 0.0
        %v591 = vmax.f32 %v545, 0.0
        %v592 = vmax.f32 %v550, 0.0
        %v593 = vmax.f32 %v555, 0.0
        %v594 = vmax.f32 %v560, 0.0
        %v595 = vmax.f32 %v565, 0.0
        %v596 = vmax.f32 %v570, 0.0
        %v597 = vmax.f32 %v575, 0.0
        %v598 = vmax.f32 %v580, 0.0
        %v599 = vld [vmem:[%s1] sm:$0x1]
        %v600 = vld [vmem:[%s356 + $0x80] sm:$0xff]
        %v601 = vld [vmem:[%s356 + $0x88] sm:$0xff]
        %v602 = vld [vmem:[%s356 + $0x90] sm:$0xff]
        %v603 = vld [vmem:[%s356 + $0x98] sm:$0xff]
        %v604 = vld [vmem:[%s356 + $0xa0] sm:$0xff]
        %v605 = vld [vmem:[%s356 + $0xa8] sm:$0xff]
        %v606 = vld [vmem:[%s356 + $0xb0] sm:$0xff]
        %v607 = vld [vmem:[%s356 + $0xb8] sm:$0xff]
        %v608 = vld [vmem:[%s356 + $0xc0] sm:$0xff]
        %v609 = vld [vmem:[%s356 + $0xc8] sm:$0xff]
        %v610 = vld [vmem:[%s356 + $0xd0] sm:$0xff]
        %v611 = vld [vmem:[%s356 + $0xd8] sm:$0xff]
        %v612 = vld [vmem:[%s356 + $0xe0] sm:$0xff]
        %v613 = vld [vmem:[%s356 + $0xe8] sm:$0xff]
        %v614 = vld [vmem:[%s356 + $0xf0] sm:$0xff]
        %v615 = vld [vmem:[%s356 + $0xf8] sm:$0xff]
        %v617 = vsel %vm385, %v600, 0
        %v620 = vsel %vm385, %v601, 0
        %v623 = vsel %vm385, %v602, 0
        %v626 = vsel %vm385, %v603, 0
        %v629 = vsel %vm385, %v604, 0
        %v632 = vsel %vm385, %v605, 0
        %v635 = vsel %vm385, %v606, 0
        %v638 = vsel %vm385, %v607, 0
        %v641 = vsel %vm385, %v608, 0
        %v644 = vsel %vm385, %v609, 0
        %v647 = vsel %vm385, %v610, 0
        %v650 = vsel %vm385, %v611, 0
        %v653 = vsel %vm385, %v612, 0
        %v656 = vsel %vm385, %v613, 0
        %v659 = vsel %vm385, %v614, 0
        %v662 = vsel %vm385, %v615, 0
        %664 = vmatprep.subr.mxu0 0.0
        %665 = vmatpush1.msra.mxu0 0.0
        %666 = vmatprep.subr.mxu0 0.0
        %667 = vmatpush1.msra.mxu0 0.0
        %668 = vmatprep.subr.mxu0 0.0
        %669 = vmatpush1.msra.mxu0 0.0
        %670 = vmatprep.subr.mxu0 0.0
        %671 = vmatpush1.msra.mxu0 0.0
        %672 = vmatprep.subr.mxu0 0.0
        %673 = vmatpush1.msra.mxu0 0.0
        %674 = vmatprep.subr.mxu0 0.0
        %675 = vmatpush1.msra.mxu0 0.0
        %676 = vmatprep.subr.mxu0 0.0
        %677 = vmatpush1.msra.mxu0 0.0
        %678 = vmatprep.subr.mxu0 0.0
        %679 = vmatpush1.msra.mxu0 0.0
        %680 = vmatprep.subr.mxu0 0.0
        %681 = vmatpush1.msra.mxu0 0.0
        %682 = vmatprep.subr.mxu0 0.0
        %683 = vmatpush1.msra.mxu0 0.0
        %684 = vmatprep.subr.mxu0 0.0
        %685 = vmatpush1.msra.mxu0 0.0
        %686 = vmatprep.subr.mxu0 0.0
        %687 = vmatpush1.msra.mxu0 %v436
        %688 = vmatprep.subr.mxu0 0.0
        %689 = vmatpush1.msra.mxu0 %v360
        %690 = vmatprep.subr.mxu0 0.0
        %691 = vmatpush1.msra.mxu0 %v359
        %692 = vmatprep.subr.mxu0 0.0
        %693 = vmatpush1.msra.mxu0 %v358
        %694 = vmatprep.subr.mxu0 0.0
        %695 = vmatpush1.msra.mxu0 %v357
        %696 = vmatprep.subr.mxu0 0.0
        %697 = vmatpush2.msra.mxu0 0.0
        %698 = vmatprep.subr.mxu0 0.0
        %699 = vmatpush2.msra.mxu0 0.0
        %700 = vmatprep.subr.mxu0 0.0
        %701 = vmatpush2.msra.mxu0 0.0
        %702 = vmatprep.subr.mxu0 0.0
        %703 = vmatpush2.msra.mxu0 0.0
        %704 = vmatprep.subr.mxu0 0.0
        %705 = vmatpush2.msra.mxu0 0.0
        %706 = vmatprep.subr.mxu0 0.0
        %707 = vmatpush2.msra.mxu0 0.0
        %708 = vmatprep.subr.mxu0 0.0
        %709 = vmatpush2.msra.mxu0 0.0
        %710 = vmatprep.subr.mxu0 0.0
        %711 = vmatpush2.msra.mxu0 0.0
        %712 = vmatprep.subr.mxu0 0.0
        %713 = vmatpush2.msra.mxu0 0.0
        %714 = vmatprep.subr.mxu0 0.0
        %715 = vmatpush2.msra.mxu0 0.0
        %716 = vmatprep.subr.mxu0 0.0
        %717 = vmatpush2.msra.mxu0 0.0
        %718 = vmatprep.subr.mxu0 0.0
        %719 = vmatpush2.msra.mxu0 0.0
        %720 = vmatprep.subr.mxu0 0.0
        %721 = vmatpush2.msra.mxu0 0.0
        %722 = vmatprep.subr.mxu0 0.0
        %723 = vmatpush2.msra.mxu0 0.0
        %724 = vmatprep.subr.mxu0 0.0
        %725 = vmatpush2.msra.mxu0 0.0
        %726 = vmatprep.subr.mxu0 0.0
        %727 = vmatpush2.msra.mxu0 0.0
        %728 = vmatprep.mubr.f32.mxu0 0.0
        %729 = vmatmul.mubr.f32.gmra.mxu0 %v617
        %v730 = vpop.f32.mrf.mxu0
        %v731 = vadd.f32 %v383, %v730
        %v732 = vpop.f32.mrf.mxu0
        %733 = vmatprep.mubr.f32.mxu0 0.0
        %734 = vmatmul.mubr.f32.gmra.mxu0 %v620
        %v735 = vpop.f32.mrf.mxu0
        %v736 = vadd.f32 %v383, %v735
        %v737 = vpop.f32.mrf.mxu0
        %738 = vmatprep.mubr.f32.mxu0 0.0
        %739 = vmatmul.mubr.f32.gmra.mxu0 %v623
        %v740 = vpop.f32.mrf.mxu0
        %v741 = vadd.f32 %v383, %v740
        %v742 = vpop.f32.mrf.mxu0
        %743 = vmatprep.mubr.f32.mxu0 0.0
        %744 = vmatmul.mubr.f32.gmra.mxu0 %v626
        %v745 = vpop.f32.mrf.mxu0
        %v746 = vadd.f32 %v383, %v745
        %v747 = vpop.f32.mrf.mxu0
        %748 = vmatprep.mubr.f32.mxu0 0.0
        %749 = vmatmul.mubr.f32.gmra.mxu0 %v629
        %v750 = vpop.f32.mrf.mxu0
        %v751 = vadd.f32 %v383, %v750
        %v752 = vpop.f32.mrf.mxu0
        %753 = vmatprep.mubr.f32.mxu0 0.0
        %754 = vmatmul.mubr.f32.gmra.mxu0 %v632
        %v755 = vpop.f32.mrf.mxu0
        %v756 = vadd.f32 %v383, %v755
        %v757 = vpop.f32.mrf.mxu0
        %758 = vmatprep.mubr.f32.mxu0 0.0
        %759 = vmatmul.mubr.f32.gmra.mxu0 %v635
        %v760 = vpop.f32.mrf.mxu0
        %v761 = vadd.f32 %v383, %v760
        %v762 = vpop.f32.mrf.mxu0
        %763 = vmatprep.mubr.f32.mxu0 0.0
        %764 = vmatmul.mubr.f32.gmra.mxu0 %v638
        %v765 = vpop.f32.mrf.mxu0
        %v766 = vadd.f32 %v383, %v765
        %v767 = vpop.f32.mrf.mxu0
        %768 = vmatprep.mubr.f32.mxu0 0.0
        %769 = vmatmul.mubr.f32.gmra.mxu0 %v641
        %v770 = vpop.f32.mrf.mxu0
        %v771 = vadd.f32 %v383, %v770
        %v772 = vpop.f32.mrf.mxu0
        %773 = vmatprep.mubr.f32.mxu0 0.0
        %774 = vmatmul.mubr.f32.gmra.mxu0 %v644
        %v775 = vpop.f32.mrf.mxu0
        %v776 = vadd.f32 %v383, %v775
        %v777 = vpop.f32.mrf.mxu0
        %778 = vmatprep.mubr.f32.mxu0 0.0
        %779 = vmatmul.mubr.f32.gmra.mxu0 %v647
        %v780 = vpop.f32.mrf.mxu0
        %v781 = vadd.f32 %v383, %v780
        %v782 = vpop.f32.mrf.mxu0
        %783 = vmatprep.mubr.f32.mxu0 0.0
        %784 = vmatmul.mubr.f32.gmra.mxu0 %v650
        %v785 = vpop.f32.mrf.mxu0
        %v786 = vadd.f32 %v383, %v785
        %v787 = vpop.f32.mrf.mxu0
        %788 = vmatprep.mubr.f32.mxu0 0.0
        %789 = vmatmul.mubr.f32.gmra.mxu0 %v653
        %v790 = vpop.f32.mrf.mxu0
        %v791 = vadd.f32 %v383, %v790
        %v792 = vpop.f32.mrf.mxu0
        %793 = vmatprep.mubr.f32.mxu0 0.0
        %794 = vmatmul.mubr.f32.gmra.mxu0 %v656
        %v795 = vpop.f32.mrf.mxu0
        %v796 = vadd.f32 %v383, %v795
        %v797 = vpop.f32.mrf.mxu0
        %798 = vmatprep.mubr.f32.mxu0 0.0
        %799 = vmatmul.mubr.f32.gmra.mxu0 %v659
        %v800 = vpop.f32.mrf.mxu0
        %v801 = vadd.f32 %v383, %v800
        %v802 = vpop.f32.mrf.mxu0
        %803 = vmatprep.mubr.f32.mxu0 0.0
        %804 = vmatmul.mubr.f32.gmra.mxu0 %v662
        %v805 = vpop.f32.mrf.mxu0
        %v806 = vadd.f32 %v383, %v805
        %v807 = vpop.f32.mrf.mxu0
        %808 = vdwg.mxu0
        %v809 = vmax.f32 %v731, 0.0
        %v810 = vmax.f32 %v736, 0.0
        %v811 = vmax.f32 %v741, 0.0
        %v812 = vmax.f32 %v746, 0.0
        %v813 = vmax.f32 %v751, 0.0
        %v814 = vmax.f32 %v756, 0.0
        %v815 = vmax.f32 %v761, 0.0
        %v816 = vmax.f32 %v766, 0.0
        %v817 = vmax.f32 %v771, 0.0
        %v818 = vmax.f32 %v776, 0.0
        %v819 = vmax.f32 %v781, 0.0
        %v820 = vmax.f32 %v786, 0.0
        %v821 = vmax.f32 %v791, 0.0
        %v822 = vmax.f32 %v796, 0.0
        %v823 = vmax.f32 %v801, 0.0
        %v824 = vmax.f32 %v806, 0.0
        %v825 = vld [vmem:[%s1 + $0x1] sm:$0x1]
        %826 = vmatprep.subr.mxu0 0.0
        %827 = vmatpush1.msra.mxu0 %v824
        %828 = vmatprep.subr.mxu0 0.0
        %829 = vmatpush1.msra.mxu0 %v823
        %830 = vmatprep.subr.mxu0 0.0
        %831 = vmatpush1.msra.mxu0 %v822
        %832 = vmatprep.subr.mxu0 0.0
        %833 = vmatpush1.msra.mxu0 %v821
        %834 = vmatprep.subr.mxu0 0.0
        %835 = vmatpush1.msra.mxu0 %v820
        %836 = vmatprep.subr.mxu0 0.0
        %837 = vmatpush1.msra.mxu0 %v819
        %838 = vmatprep.subr.mxu0 0.0
        %839 = vmatpush1.msra.mxu0 %v818
        %840 = vmatprep.subr.mxu0 0.0
        %841 = vmatpush1.msra.mxu0 %v817
        %842 = vmatprep.subr.mxu0 0.0
        %843 = vmatpush1.msra.mxu0 %v816
        %844 = vmatprep.subr.mxu0 0.0
        %845 = vmatpush1.msra.mxu0 %v815
        %846 = vmatprep.subr.mxu0 0.0
        %847 = vmatpush1.msra.mxu0 %v814
        %848 = vmatprep.subr.mxu0 0.0
        %849 = vmatpush1.msra.mxu0 %v813
        %850 = vmatprep.subr.mxu0 0.0
        %851 = vmatpush1.msra.mxu0 %v812
        %852 = vmatprep.subr.mxu0 0.0
        %853 = vmatpush1.msra.mxu0 %v811
        %854 = vmatprep.subr.mxu0 0.0
        %855 = vmatpush1.msra.mxu0 %v810
        %856 = vmatprep.subr.mxu0 0.0
        %857 = vmatpush1.msra.mxu0 %v809
        %858 = vmatprep.subr.mxu0 0.0
        %859 = vmatpush2.msra.mxu0 0.0
        %860 = vmatprep.subr.mxu0 0.0
        %861 = vmatpush2.msra.mxu0 0.0
        %862 = vmatprep.subr.mxu0 0.0
        %863 = vmatpush2.msra.mxu0 0.0
        %864 = vmatprep.subr.mxu0 0.0
        %865 = vmatpush2.msra.mxu0 0.0
        %866 = vmatprep.subr.mxu0 0.0
        %867 = vmatpush2.msra.mxu0 0.0
        %868 = vmatprep.subr.mxu0 0.0
        %869 = vmatpush2.msra.mxu0 0.0
        %870 = vmatprep.subr.mxu0 0.0
        %871 = vmatpush2.msra.mxu0 0.0
        %872 = vmatprep.subr.mxu0 0.0
        %873 = vmatpush2.msra.mxu0 0.0
        %874 = vmatprep.subr.mxu0 0.0
        %875 = vmatpush2.msra.mxu0 0.0
        %876 = vmatprep.subr.mxu0 0.0
        %877 = vmatpush2.msra.mxu0 0.0
        %878 = vmatprep.subr.mxu0 0.0
        %879 = vmatpush2.msra.mxu0 0.0
        %880 = vmatprep.subr.mxu0 0.0
        %881 = vmatpush2.msra.mxu0 0.0
        %882 = vmatprep.subr.mxu0 0.0
        %883 = vmatpush2.msra.mxu0 0.0
        %884 = vmatprep.subr.mxu0 0.0
        %885 = vmatpush2.msra.mxu0 0.0
        %886 = vmatprep.subr.mxu0 0.0
        %887 = vmatpush2.msra.mxu0 0.0
        %888 = vmatprep.subr.mxu0 0.0
        %889 = vmatpush2.msra.mxu0 0.0
        %890 = vmatprep.mubr.f32.mxu0 0.0
        %891 = vmatmul.mubr.f32.gmra.mxu0 %v825
        %v892 = vpop.f32.mrf.mxu0
        %v893 = vadd.f32 0.0, %v892
        %v894 = vpop.f32.mrf.mxu0
        %895 = vdwg.mxu0
        %896 = vmatprep.subr.mxu0 0.0
        %897 = vmatpush1.msra.mxu0 %v598
        %898 = vmatprep.subr.mxu0 0.0
        %899 = vmatpush1.msra.mxu0 %v597
        %900 = vmatprep.subr.mxu0 0.0
        %901 = vmatpush1.msra.mxu0 %v596
        %902 = vmatprep.subr.mxu0 0.0
        %903 = vmatpush1.msra.mxu0 %v595
        %904 = vmatprep.subr.mxu0 0.0
        %905 = vmatpush1.msra.mxu0 %v594
        %906 = vmatprep.subr.mxu0 0.0
        %907 = vmatpush1.msra.mxu0 %v593
        %908 = vmatprep.subr.mxu0 0.0
        %909 = vmatpush1.msra.mxu0 %v592
        %910 = vmatprep.subr.mxu0 0.0
        %911 = vmatpush1.msra.mxu0 %v591
        %912 = vmatprep.subr.mxu0 0.0
        %913 = vmatpush1.msra.mxu0 %v590
        %914 = vmatprep.subr.mxu0 0.0
        %915 = vmatpush1.msra.mxu0 %v589
        %916 = vmatprep.subr.mxu0 0.0
        %917 = vmatpush1.msra.mxu0 %v588
        %918 = vmatprep.subr.mxu0 0.0
        %919 = vmatpush1.msra.mxu0 %v587
        %920 = vmatprep.subr.mxu0 0.0
        %921 = vmatpush1.msra.mxu0 %v586
        %922 = vmatprep.subr.mxu0 0.0
        %923 = vmatpush1.msra.mxu0 %v585
        %924 = vmatprep.subr.mxu0 0.0
        %925 = vmatpush1.msra.mxu0 %v584
        %926 = vmatprep.subr.mxu0 0.0
        %927 = vmatpush1.msra.mxu0 %v583
        %928 = vmatprep.subr.mxu0 0.0
        %929 = vmatpush2.msra.mxu0 0.0
        %930 = vmatprep.subr.mxu0 0.0
        %931 = vmatpush2.msra.mxu0 0.0
        %932 = vmatprep.subr.mxu0 0.0
        %933 = vmatpush2.msra.mxu0 0.0
        %934 = vmatprep.subr.mxu0 0.0
        %935 = vmatpush2.msra.mxu0 0.0
        %936 = vmatprep.subr.mxu0 0.0
        %937 = vmatpush2.msra.mxu0 0.0
        %938 = vmatprep.subr.mxu0 0.0
        %939 = vmatpush2.msra.mxu0 0.0
        %940 = vmatprep.subr.mxu0 0.0
        %941 = vmatpush2.msra.mxu0 0.0
        %942 = vmatprep.subr.mxu0 0.0
        %943 = vmatpush2.msra.mxu0 0.0
        %944 = vmatprep.subr.mxu0 0.0
        %945 = vmatpush2.msra.mxu0 0.0
        %946 = vmatprep.subr.mxu0 0.0
        %947 = vmatpush2.msra.mxu0 0.0
        %948 = vmatprep.subr.mxu0 0.0
        %949 = vmatpush2.msra.mxu0 0.0
        %950 = vmatprep.subr.mxu0 0.0
        %951 = vmatpush2.msra.mxu0 0.0
        %952 = vmatprep.subr.mxu0 0.0
        %953 = vmatpush2.msra.mxu0 0.0
        %954 = vmatprep.subr.mxu0 0.0
        %955 = vmatpush2.msra.mxu0 0.0
        %956 = vmatprep.subr.mxu0 0.0
        %957 = vmatpush2.msra.mxu0 0.0
        %958 = vmatprep.subr.mxu0 0.0
        %959 = vmatpush2.msra.mxu0 0.0
        %960 = vmatprep.mubr.f32.mxu0 0.0
        %961 = vmatmul.mubr.f32.gmra.mxu0 %v599
        %v962 = vpop.f32.mrf.mxu0
        %v963 = vadd.f32 %v893, %v962
        %v964 = vpop.f32.mrf.mxu0
        %965 = vdwg.mxu0
        %v966 = vld [vmem:[%s4] sm:$0xff]
        %v967 = vld [vmem:[%s4 + $0x8] sm:$0xff]
        %v968 = vld [vmem:[%s4 + $0x10] sm:$0xff]
        %v969 = vld [vmem:[%s4 + $0x18] sm:$0xff]
        %v970 = vld [vmem:[%s5] sm:$0x1]
        %vm971 = vcmask 261120
        %v973 = vsel %vm971, %v963, 0
        %975 = vmatprep.subr.mxu0 0.0
        %976 = vmatpush1.msra.mxu0 0.0
        %977 = vmatprep.subr.mxu0 0.0
        %978 = vmatpush1.msra.mxu0 0.0
        %979 = vmatprep.subr.mxu0 0.0
        %980 = vmatpush1.msra.mxu0 0.0
        %981 = vmatprep.subr.mxu0 0.0
        %982 = vmatpush1.msra.mxu0 0.0
        %983 = vmatprep.subr.mxu0 0.0
        %984 = vmatpush1.msra.mxu0 0.0
        %985 = vmatprep.subr.mxu0 0.0
        %986 = vmatpush1.msra.mxu0 0.0
        %987 = vmatprep.subr.mxu0 0.0
        %988 = vmatpush1.msra.mxu0 0.0
        %989 = vmatprep.subr.mxu0 0.0
        %990 = vmatpush1.msra.mxu0 0.0
        %991 = vmatprep.subr.mxu0 0.0
        %992 = vmatpush1.msra.mxu0 0.0
        %993 = vmatprep.subr.mxu0 0.0
        %994 = vmatpush1.msra.mxu0 0.0
        %995 = vmatprep.subr.mxu0 0.0
        %996 = vmatpush1.msra.mxu0 0.0
        %997 = vmatprep.subr.mxu0 0.0
        %998 = vmatpush1.msra.mxu0 0.0
        %999 = vmatprep.subr.mxu0 0.0
        %1000 = vmatpush1.msra.mxu0 %v969
        %1001 = vmatprep.subr.mxu0 0.0
        %1002 = vmatpush1.msra.mxu0 %v968
        %1003 = vmatprep.subr.mxu0 0.0
        %1004 = vmatpush1.msra.mxu0 %v967
        %1005 = vmatprep.subr.mxu0 0.0
        %1006 = vmatpush1.msra.mxu0 %v966
        %1007 = vmatprep.subr.mxu0 0.0
        %1008 = vmatpush2.msra.mxu0 0.0
        %1009 = vmatprep.subr.mxu0 0.0
        %1010 = vmatpush2.msra.mxu0 0.0
        %1011 = vmatprep.subr.mxu0 0.0
        %1012 = vmatpush2.msra.mxu0 0.0
        %1013 = vmatprep.subr.mxu0 0.0
        %1014 = vmatpush2.msra.mxu0 0.0
        %1015 = vmatprep.subr.mxu0 0.0
        %1016 = vmatpush2.msra.mxu0 0.0
        %1017 = vmatprep.subr.mxu0 0.0
        %1018 = vmatpush2.msra.mxu0 0.0
        %1019 = vmatprep.subr.mxu0 0.0
        %1020 = vmatpush2.msra.mxu0 0.0
        %1021 = vmatprep.subr.mxu0 0.0
        %1022 = vmatpush2.msra.mxu0 0.0
        %1023 = vmatprep.subr.mxu0 0.0
        %1024 = vmatpush2.msra.mxu0 0.0
        %1025 = vmatprep.subr.mxu0 0.0
        %1026 = vmatpush2.msra.mxu0 0.0
        %1027 = vmatprep.subr.mxu0 0.0
        %1028 = vmatpush2.msra.mxu0 0.0
        %1029 = vmatprep.subr.mxu0 0.0
        %1030 = vmatpush2.msra.mxu0 0.0
        %1031 = vmatprep.subr.mxu0 0.0
        %1032 = vmatpush2.msra.mxu0 0.0
        %1033 = vmatprep.subr.mxu0 0.0
        %1034 = vmatpush2.msra.mxu0 0.0
        %1035 = vmatprep.subr.mxu0 0.0
        %1036 = vmatpush2.msra.mxu0 0.0
        %1037 = vmatprep.subr.mxu0 0.0
        %1038 = vmatpush2.msra.mxu0 0.0
        %1039 = vmatprep.mubr.f32.mxu0 0.0
        %1040 = vmatmul.mubr.f32.gmra.mxu0 %v973
        %v1041 = vpop.f32.mrf.mxu0
        %v1042 = vadd.f32 %v970, %v1041
        %v1043 = vpop.f32.mrf.mxu0
        %1044 = vdwg.mxu0
        %v1045 = vmax.f32 %v1042, 0.0
        %v1046 = vld [vmem:[%s6] sm:$0xff]
        %v1047 = vld [vmem:[%s6 + $0x8] sm:$0xff]
        %v1048 = vld [vmem:[%s6 + $0x10] sm:$0xff]
        %v1049 = vld [vmem:[%s6 + $0x18] sm:$0xff]
        %v1050 = vld [vmem:[%s7] sm:$0x1]
        %v1052 = vsel %vm971, %v1045, 0
        %1054 = vmatprep.subr.mxu0 0.0
        %1055 = vmatpush1.msra.mxu0 0.0
        %1056 = vmatprep.subr.mxu0 0.0
        %1057 = vmatpush1.msra.mxu0 0.0
        %1058 = vmatprep.subr.mxu0 0.0
        %1059 = vmatpush1.msra.mxu0 0.0
        %1060 = vmatprep.subr.mxu0 0.0
        %1061 = vmatpush1.msra.mxu0 0.0
        %1062 = vmatprep.subr.mxu0 0.0
        %1063 = vmatpush1.msra.mxu0 0.0
        %1064 = vmatprep.subr.mxu0 0.0
        %1065 = vmatpush1.msra.mxu0 0.0
        %1066 = vmatprep.subr.mxu0 0.0
        %1067 = vmatpush1.msra.mxu0 0.0
        %1068 = vmatprep.subr.mxu0 0.0
        %1069 = vmatpush1.msra.mxu0 0.0
        %1070 = vmatprep.subr.mxu0 0.0
        %1071 = vmatpush1.msra.mxu0 0.0
        %1072 = vmatprep.subr.mxu0 0.0
        %1073 = vmatpush1.msra.mxu0 0.0
        %1074 = vmatprep.subr.mxu0 0.0
        %1075 = vmatpush1.msra.mxu0 0.0
        %1076 = vmatprep.subr.mxu0 0.0
        %1077 = vmatpush1.msra.mxu0 0.0
        %1078 = vmatprep.subr.mxu0 0.0
        %1079 = vmatpush1.msra.mxu0 %v1049
        %1080 = vmatprep.subr.mxu0 0.0
        %1081 = vmatpush1.msra.mxu0 %v1048
        %1082 = vmatprep.subr.mxu0 0.0
        %1083 = vmatpush1.msra.mxu0 %v1047
        %1084 = vmatprep.subr.mxu0 0.0
        %1085 = vmatpush1.msra.mxu0 %v1046
        %1086 = vmatprep.subr.mxu0 0.0
        %1087 = vmatpush2.msra.mxu0 0.0
        %1088 = vmatprep.subr.mxu0 0.0
        %1089 = vmatpush2.msra.mxu0 0.0
        %1090 = vmatprep.subr.mxu0 0.0
        %1091 = vmatpush2.msra.mxu0 0.0
        %1092 = vmatprep.subr.mxu0 0.0
        %1093 = vmatpush2.msra.mxu0 0.0
        %1094 = vmatprep.subr.mxu0 0.0
        %1095 = vmatpush2.msra.mxu0 0.0
        %1096 = vmatprep.subr.mxu0 0.0
        %1097 = vmatpush2.msra.mxu0 0.0
        %1098 = vmatprep.subr.mxu0 0.0
        %1099 = vmatpush2.msra.mxu0 0.0
        %1100 = vmatprep.subr.mxu0 0.0
        %1101 = vmatpush2.msra.mxu0 0.0
        %1102 = vmatprep.subr.mxu0 0.0
        %1103 = vmatpush2.msra.mxu0 0.0
        %1104 = vmatprep.subr.mxu0 0.0
        %1105 = vmatpush2.msra.mxu0 0.0
        %1106 = vmatprep.subr.mxu0 0.0
        %1107 = vmatpush2.msra.mxu0 0.0
        %1108 = vmatprep.subr.mxu0 0.0
        %1109 = vmatpush2.msra.mxu0 0.0
        %1110 = vmatprep.subr.mxu0 0.0
        %1111 = vmatpush2.msra.mxu0 0.0
        %1112 = vmatprep.subr.mxu0 0.0
        %1113 = vmatpush2.msra.mxu0 0.0
        %1114 = vmatprep.subr.mxu0 0.0
        %1115 = vmatpush2.msra.mxu0 0.0
        %1116 = vmatprep.subr.mxu0 0.0
        %1117 = vmatpush2.msra.mxu0 0.0
        %1118 = vmatprep.mubr.f32.mxu0 0.0
        %1119 = vmatmul.mubr.f32.gmra.mxu0 %v1052
        %v1120 = vpop.f32.mrf.mxu0
        %v1121 = vadd.f32 %v1050, %v1120
        %v1122 = vpop.f32.mrf.mxu0
        %1123 = vdwg.mxu0
        %v1124 = vmax.f32 %v1121, 0.0
        %v1125 = vld [vmem:[%s8] sm:$0xff]
        %v1126 = vld [vmem:[%s8 + $0x8] sm:$0xff]
        %v1127 = vld [vmem:[%s9] sm:$0x1]
        %vm1128 = vcmask 130048
        %v1130 = vsel %vm1128, %v1124, 0
        %1132 = vmatprep.subr.mxu0 0.0
        %1133 = vmatpush1.msra.mxu0 0.0
        %1134 = vmatprep.subr.mxu0 0.0
        %1135 = vmatpush1.msra.mxu0 0.0
        %1136 = vmatprep.subr.mxu0 0.0
        %1137 = vmatpush1.msra.mxu0 0.0
        %1138 = vmatprep.subr.mxu0 0.0
        %1139 = vmatpush1.msra.mxu0 0.0
        %1140 = vmatprep.subr.mxu0 0.0
        %1141 = vmatpush1.msra.mxu0 0.0
        %1142 = vmatprep.subr.mxu0 0.0
        %1143 = vmatpush1.msra.mxu0 0.0
        %1144 = vmatprep.subr.mxu0 0.0
        %1145 = vmatpush1.msra.mxu0 0.0
        %1146 = vmatprep.subr.mxu0 0.0
        %1147 = vmatpush1.msra.mxu0 0.0
        %1148 = vmatprep.subr.mxu0 0.0
        %1149 = vmatpush1.msra.mxu0 0.0
        %1150 = vmatprep.subr.mxu0 0.0
        %1151 = vmatpush1.msra.mxu0 0.0
        %1152 = vmatprep.subr.mxu0 0.0
        %1153 = vmatpush1.msra.mxu0 0.0
        %1154 = vmatprep.subr.mxu0 0.0
        %1155 = vmatpush1.msra.mxu0 0.0
        %1156 = vmatprep.subr.mxu0 0.0
        %1157 = vmatpush1.msra.mxu0 0.0
        %1158 = vmatprep.subr.mxu0 0.0
        %1159 = vmatpush1.msra.mxu0 0.0
        %1160 = vmatprep.subr.mxu0 0.0
        %1161 = vmatpush1.msra.mxu0 %v1126
        %1162 = vmatprep.subr.mxu0 0.0
        %1163 = vmatpush1.msra.mxu0 %v1125
        %1164 = vmatprep.subr.mxu0 0.0
        %1165 = vmatpush2.msra.mxu0 0.0
        %1166 = vmatprep.subr.mxu0 0.0
        %1167 = vmatpush2.msra.mxu0 0.0
        %1168 = vmatprep.subr.mxu0 0.0
        %1169 = vmatpush2.msra.mxu0 0.0
        %1170 = vmatprep.subr.mxu0 0.0
        %1171 = vmatpush2.msra.mxu0 0.0
        %1172 = vmatprep.subr.mxu0 0.0
        %1173 = vmatpush2.msra.mxu0 0.0
        %1174 = vmatprep.subr.mxu0 0.0
        %1175 = vmatpush2.msra.mxu0 0.0
        %1176 = vmatprep.subr.mxu0 0.0
        %1177 = vmatpush2.msra.mxu0 0.0
        %1178 = vmatprep.subr.mxu0 0.0
        %1179 = vmatpush2.msra.mxu0 0.0
        %1180 = vmatprep.subr.mxu0 0.0
        %1181 = vmatpush2.msra.mxu0 0.0
        %1182 = vmatprep.subr.mxu0 0.0
        %1183 = vmatpush2.msra.mxu0 0.0
        %1184 = vmatprep.subr.mxu0 0.0
        %1185 = vmatpush2.msra.mxu0 0.0
        %1186 = vmatprep.subr.mxu0 0.0
        %1187 = vmatpush2.msra.mxu0 0.0
        %1188 = vmatprep.subr.mxu0 0.0
        %1189 = vmatpush2.msra.mxu0 0.0
        %1190 = vmatprep.subr.mxu0 0.0
        %1191 = vmatpush2.msra.mxu0 0.0
        %1192 = vmatprep.subr.mxu0 0.0
        %1193 = vmatpush2.msra.mxu0 0.0
        %1194 = vmatprep.subr.mxu0 0.0
        %1195 = vmatpush2.msra.mxu0 0.0
        %1196 = vmatprep.mubr.f32.mxu0 0.0
        %1197 = vmatmul.mubr.f32.gmra.mxu0 %v1130
        %v1198 = vpop.f32.mrf.mxu0
        %v1199 = vadd.f32 %v1127, %v1198
        %v1200 = vpop.f32.mrf.mxu0
        %1201 = vdwg.mxu0
        %vm1202 = vcmask 57344
        %1203 = vst.msk [vmem:[%s351] sm:$0x1] %vm1202, %v1199
        %s1204 = sand.u32 %s247, 1
        %s1205 = scalar_lea.sflag [#allocation3], %s1204
        %s1206 = sand.u32 %s247, 1
        %s1207 = scalar_lea.vmem [#allocation2], %s1206
        // Predicated region
        $region61: #{associate_style_forward.1} parent=59 // pred_check
          %p1208 = pneg %p257
        $region62: #{associate_style_forward.1} parent=59 // pred_check_branch
          %1210 = sbr.rel (%p1208) target = $region64
        $region63: #{associate_style_forward.1} parent=59 // pred_region
          %s1212 = ssub.s32 16, 16
          %1213 = vsyncadd %s1205, %s1212
          %s1214 = smul.addr %s24, 16
          %s1215 = scalar_lea.hbm %s10, %s1214
          %s1217 = sshll.u32 %s1207, 4
          %s1218 = int_to_ptr.vmem [resolvable:$true] %s1217
          %1220 = dma.vmem_to_hbm [thread:$0]  %s1218, 16, %s1215, %s1205
        $region64: #{associate_style_forward.1} parent=59 // pred_fallthru
          _
      $region60: #{associate_style_forward.1} parent=5 // pred_fallthru
        _
      %p1221 = scmp.le.s32.totalorder 2, %s19
      // Predicated region
      $region65: #{associate_style_forward.1} parent=5 // pred_check
        %p1222 = pneg %p1221
      $region66: #{associate_style_forward.1} parent=5 // pred_check_branch
        %1224 = sbr.rel (%p1222) target = $region68
      $region67: #{associate_style_forward.1} parent=5 // pred_region
        %s1225 = ssub.s32 %s19, 2
        // Predicated region
        $region69: #{associate_style_forward.1} parent=67 // pred_check
          %p1226 = pneg %p263
        $region70: #{associate_style_forward.1} parent=67 // pred_check_branch
          %1228 = sbr.rel (%p1226) target = $region72
        $region71: #{associate_style_forward.1} parent=67 // pred_region
          %s1229 = sand.u32 %s248, 1
          %s1230 = scalar_lea.sflag [#allocation3], %s1229
          %s1231 = sand.u32 %s248, 1
          %s1232 = scalar_lea.vmem [#allocation2], %s1231
          %1233 = dma.done %s1230, 16
        $region72: #{associate_style_forward.1} parent=67 // pred_fallthru
          _
      $region68: #{associate_style_forward.1} parent=5 // pred_fallthru
        _
    $region6: #{associate_style_forward.1} parent=1 // loop_footer
      %s23 = sadd.s32 1, %s19
    $region7: #{associate_style_forward.1} parent=1 // loop_footer_branch
      %18 = sbr.rel target = $region3
    $region8: #{associate_style_forward.1} parent=1 // loop_exit
      _
    %1234 = vsyncpa [#allocation3], 1
    %s1235 = scalar_lea.sflag [#allocation3], 1
    %1236 = vsyncpa %s1235, 1

</llo_original>
